<compile_context>
chip_gen: v6e
topology: v6e:2x2x1
jax: 0.10.0
libtpu: 0.0.40
codegen_flags: <defaults>
</compile_context>

<pallas_src>
import jax
import jax.numpy as jnp
from jax.experimental import pallas as pl
from jax.experimental.pallas import tpu as pltpu


def mlp_kernel(x_ref, w1_ref, b1_ref, w2_ref, b2_ref, o_ref):
    # fc1 -> sigmoid -> fc2, fused on the current VMEM tile.
    h = jnp.dot(x_ref[...], w1_ref[...], preferred_element_type=jnp.float32)
    # Sigmoid via jax.nn.sigmoid: transcendental routed to the EUP slot,
    # keeping the VALU slot free.
    h = jax.nn.sigmoid(h + b1_ref[...])
    y = jnp.dot(h, w2_ref[...], preferred_element_type=jnp.float32) + b2_ref[...]
    o_ref[...] = y.astype(o_ref.dtype)


def _round_up(n, m):
    return ((n + m - 1) // m) * m


def my_neural_net_forward(x, w1, b1, w2, b2, *, block_b=8192):
    """Forward pass of MyNeuralNet.

    x: (B, D_in); w1: (D_in, H); b1: (1, H); w2: (H, D_out); b2: (1, D_out).
    Weights are stored (in, out) = transpose of PyTorch nn.Linear's (out, in).
    """
    B, D_in = x.shape
    H = w1.shape[1]
    D_out = w2.shape[1]

    # ---------- Small batch: single shot, whole problem resident in VMEM. ----------
    if B <= block_b:
        return pl.pallas_call(
            mlp_kernel,
            out_shape=jax.ShapeDtypeStruct((B, D_out), x.dtype),
            in_specs=[pl.BlockSpec(memory_space=pltpu.MemorySpace.VMEM)] * 5,
            out_specs=pl.BlockSpec(memory_space=pltpu.MemorySpace.VMEM),
        )(x, w1, b1, w2, b2)

    # ---------- Large batch: tiled grid over batch, lane-dense row packing. ----------
    # Pack `pack` consecutive batch rows into one lane-dense row when D_out
    # divides 128; otherwise fall back to unpacked tiling (pack = 1).
    pack = (128 // D_out) if (D_out < 128 and 128 % D_out == 0) else 1
    align = pack * 8  # packed tile sublane count must be a multiple of 8

    # Amortize per-step overhead with big tiles, but keep >=4 grid steps so the
    # v7x "parallel" batch axis leaves each of 2 cores >=2 steps to pipeline.
    tile_b = min(block_b, _round_up(pl.cdiv(B, 4), align))
    tile_b = _round_up(max(tile_b, align), align)

    B_pad = _round_up(B, tile_b)
    if B_pad > B:
        x = jnp.pad(x, ((0, B_pad - B), (0, 0)))  # zero-padded tail, sliced off below

    # Free, contiguous HBM reshape: 8 rows of 16/32 features -> 1 row of 128/256.
    x_p = x.reshape(B_pad // pack, pack * D_in)
    # Block-diagonal weight expansion + tiled biases (built once per call, outside
    # the kernel; off-diagonal blocks are exact zeros -> numerics unchanged).
    w1_p = jnp.kron(jnp.eye(pack, dtype=w1.dtype), w1)   # (pack*D_in, pack*H)
    w2_p = jnp.kron(jnp.eye(pack, dtype=w2.dtype), w2)   # (pack*H, pack*D_out)
    b1_p = jnp.tile(b1, (1, pack))                        # (1, pack*H)
    b2_p = jnp.tile(b2, (1, pack))                        # (1, pack*D_out)

    tb_p = tile_b // pack
    grid = (B_pad // tile_b,)

    out_p = pl.pallas_call(
        mlp_kernel,
        out_shape=jax.ShapeDtypeStruct((B_pad // pack, pack * D_out), x.dtype),
        grid_spec=pl.GridSpec(
            grid=grid,
            in_specs=[
                # Streamed, lane-dense batch tiles.
                pl.BlockSpec((tb_p, pack * D_in), lambda i: (i, 0)),
                # Weights / biases: VMEM-resident across all grid steps.
                pl.BlockSpec((pack * D_in, pack * H), lambda i: (0, 0)),
                pl.BlockSpec((1, pack * H), lambda i: (0, 0)),
                pl.BlockSpec((pack * H, pack * D_out), lambda i: (0, 0)),
                pl.BlockSpec((1, pack * D_out), lambda i: (0, 0)),
            ],
            out_specs=pl.BlockSpec((tb_p, pack * D_out), lambda i: (i, 0)),
        ),
        compiler_params=pltpu.CompilerParams(
            # Batch axis is embarrassingly parallel -> megacore sharding on v7x
            # (no-op on v5e/v6e).
            dimension_semantics=("parallel",),
            # ~6-7 MiB actually needed at block_b=8192 (padded footprints);
            # 32 MiB gives headroom on v5e's 16 MiB default and stays well
            # under the 64 MiB v7x physical VMEM.
            vmem_limit_bytes=32 * 1024 * 1024,
        ),
    )(x_p, w1_p, b1_p, w2_p, b2_p)

    # Free contiguous reshape back, then drop the padded tail rows.
    return out_p.reshape(B_pad, D_out)[:B]


def init_params(key, input_size, L1_dim, output_dim, init_val=None):
    """Mirrors MyNeuralNet.__init__ parameter initialization.

    Weights: normal(0, 0.1) by default (init_val=None branch).
    Biases: PyTorch nn.Linear default uniform(-1/sqrt(fan_in), 1/sqrt(fan_in)).
    Stored transposed relative to PyTorch: (in_features, out_features).
    """
    k1, k2, k3, k4 = jax.random.split(key, 4)
    if init_val is None:
        w1 = 0.1 * jax.random.normal(k1, (input_size, L1_dim), jnp.float32)
        w2 = 0.1 * jax.random.normal(k2, (L1_dim, output_dim), jnp.float32)
    elif init_val == 0:
        w1 = jnp.zeros((input_size, L1_dim), jnp.float32)
        w2 = jnp.zeros((L1_dim, output_dim), jnp.float32)
    elif init_val == "uniform":
        w1 = jax.random.uniform(k1, (input_size, L1_dim), jnp.float32, -1.0, 1.0)
        w2 = jax.random.uniform(k2, (L1_dim, output_dim), jnp.float32, -1.0, 1.0)
    else:
        raise ValueError("unsupported init_val")
    bound1 = 1.0 / jnp.sqrt(jnp.float32(input_size))
    bound2 = 1.0 / jnp.sqrt(jnp.float32(L1_dim))
    b1 = jax.random.uniform(k3, (1, L1_dim), jnp.float32, -bound1, bound1)
    b2 = jax.random.uniform(k4, (1, output_dim), jnp.float32, -bound2, bound2)
    return w1, b1, w2, b2


if __name__ == "__main__":
    input_size, L1_dim, output_dim = 32, 64, 16

    key = jax.random.PRNGKey(0)
    kx_small, kx_big, kp = jax.random.split(key, 3)
    w1, b1, w2, b2 = init_params(kp, input_size, L1_dim, output_dim, init_val=None)

    # 1) Small batch (matches original module usage): single-shot no-grid path.
    B_small = 8
    x_small = jax.random.normal(kx_small, (B_small, input_size), jnp.float32)
    out_small = jax.block_until_ready(
        my_neural_net_forward(x_small, w1, b1, w2, b2))
    ref_small = jax.nn.sigmoid(x_small @ w1 + b1) @ w2 + b2
    assert out_small.shape == (B_small, output_dim)
    assert jnp.allclose(out_small, ref_small, atol=1e-5, rtol=1e-5)

    # 2) Ragged larger batch with a small block_b to exercise the tiled,
    #    lane-dense (row-packed) grid path with tail padding + slicing.
    B_big = 1000
    x_big = jax.random.normal(kx_big, (B_big, input_size), jnp.float32)
    out_big = jax.block_until_ready(
        my_neural_net_forward(x_big, w1, b1, w2, b2, block_b=256))
    ref_big = jax.nn.sigmoid(x_big @ w1 + b1) @ w2 + b2
    assert out_big.shape == (B_big, output_dim)
    assert jnp.allclose(out_big, ref_big, atol=1e-4, rtol=1e-4)

    print("KERNEL_OK")
</pallas_src>

<mosaic_0001>
module attributes {stable_mosaic.version = 11 : i64} {
  func.func @mlp_kernel(%arg0: memref<8x32xf32, #tpu.memory_space<vmem>>, %arg1: memref<32x64xf32, #tpu.memory_space<vmem>>, %arg2: memref<1x64xf32, #tpu.memory_space<vmem>>, %arg3: memref<64x16xf32, #tpu.memory_space<vmem>>, %arg4: memref<1x16xf32, #tpu.memory_space<vmem>>, %arg5: memref<8x16xf32, #tpu.memory_space<vmem>>) attributes {dimension_semantics = [], scalar_prefetch = 0 : i64, scratch_operands = 0 : i64, tpu.core_type = #tpu.core_type<tc>} {
    %c0 = arith.constant 0 : index
    %c0_0 = arith.constant 0 : index
    %0 = vector.load %arg0[%c0, %c0_0] : memref<8x32xf32, #tpu.memory_space<vmem>>, vector<8x32xf32>
    %c0_1 = arith.constant 0 : index
    %c0_2 = arith.constant 0 : index
    %1 = vector.load %arg1[%c0_1, %c0_2] : memref<32x64xf32, #tpu.memory_space<vmem>>, vector<32x64xf32>
    %cst = arith.constant dense<0.000000e+00> : vector<8x64xf32>
    %2 = tpu.matmul %0, %1, %cst {dimension_numbers = #tpu.dot_dimension_numbers<[1], [0], [0], [1], [0, 0, 1, 1], [], []>} : vector<8x32xf32>, vector<32x64xf32>, vector<8x64xf32> -> vector<8x64xf32>
    %c0_3 = arith.constant 0 : index
    %c0_4 = arith.constant 0 : index
    %3 = vector.load %arg2[%c0_3, %c0_4] : memref<1x64xf32, #tpu.memory_space<vmem>>, vector<1x64xf32>
    %4 = vector.broadcast %3 : vector<1x64xf32> to vector<8x64xf32>
    %5 = arith.addf %2, %4 : vector<8x64xf32>
    %6 = arith.negf %5 : vector<8x64xf32>
    %7 = math.exp %6 : vector<8x64xf32>
    %cst_5 = arith.constant 1.000000e+00 : f32
    %8 = vector.broadcast %cst_5 : f32 to vector<8x64xf32>
    %9 = arith.addf %8, %7 : vector<8x64xf32>
    %10 = arith.divf %8, %9 : vector<8x64xf32>
    %c0_6 = arith.constant 0 : index
    %c0_7 = arith.constant 0 : index
    %11 = vector.load %arg3[%c0_6, %c0_7] : memref<64x16xf32, #tpu.memory_space<vmem>>, vector<64x16xf32>
    %cst_8 = arith.constant dense<0.000000e+00> : vector<8x16xf32>
    %12 = tpu.matmul %10, %11, %cst_8 {dimension_numbers = #tpu.dot_dimension_numbers<[1], [0], [0], [1], [0, 0, 1, 1], [], []>} : vector<8x64xf32>, vector<64x16xf32>, vector<8x16xf32> -> vector<8x16xf32>
    %c0_9 = arith.constant 0 : index
    %c0_10 = arith.constant 0 : index
    %13 = vector.load %arg4[%c0_9, %c0_10] : memref<1x16xf32, #tpu.memory_space<vmem>>, vector<1x16xf32>
    %14 = vector.broadcast %13 : vector<1x16xf32> to vector<8x16xf32>
    %15 = arith.addf %12, %14 : vector<8x16xf32>
    %c0_11 = arith.constant 0 : index
    %c0_12 = arith.constant 0 : index
    %16 = vector.load %arg5[%c0_11, %c0_12] : memref<8x16xf32, #tpu.memory_space<vmem>>, vector<8x16xf32>
    tpu.vector_store %arg5[%c0_11, %c0_12], %15 {strides = array<i32>} : memref<8x16xf32, #tpu.memory_space<vmem>>, vector<8x16xf32>,
    return
  }
}

</mosaic_0001>

<llo_original>
// kernel: tpu_custom_call.1
$region0: #{tpu_custom_call.1}
  #allocation0 [shape = 'u32[]', space=smem, size = 0x4, offset = 0x4, fixed_abs, tag = 'smem constant byte address 0x4 - core index']
  #allocation1 [shape = 'u32[144,128]{1,0:T(1,128)}', space=vmem, size = 0x12000, scoped, tag = 'internal scratch']
  %s0 = inlined_call_operand.vmem [shape: f32[8,32], index: 0, kind: input, shape index: {}]
  %s1 = inlined_call_operand.vmem [shape: f32[32,64], index: 1, kind: input, shape index: {}]
  %s2 = inlined_call_operand.vmem [shape: f32[1,64], index: 2, kind: input, shape index: {}]
  %s3 = inlined_call_operand.vmem [shape: f32[64,16], index: 3, kind: input, shape index: {}]
  %s4 = inlined_call_operand.vmem [shape: f32[1,16], index: 4, kind: input, shape index: {}]
  %s5 = inlined_call_operand.hbm [shape: f32[8,16], index: 5, kind: output, shape index: {}]
  %s6 = sld [smem:[#allocation0]]
  $region30: #{tpu_custom_call.1} parent=0
    _
  %s8 = ssub.s32 1, %s6
  %s9 = scalar_select 0, %s8, %s6
  $region1: #{tpu_custom_call.1} parent=0
    #allocation2 [shape = 'u8[4096]{0}', space=vmem, size = 0x1000, scoped, tag = 'output window, operand 0, single buffered']
    #allocation3 [shape = 's32[1]{0}', space=sflag, size = 0x4, scoped, tag = 'scoped memory for tpu_custom_call.1']
    %10 = vsyncpa [#allocation3], 0
    // Predicated region
    $region2: #{tpu_custom_call.1} parent=1 // pred_check
      _
    $region3: #{tpu_custom_call.1} parent=1 // pred_check_branch
      %12 = sbr.rel (0) target = $region5
    $region4: #{tpu_custom_call.1} parent=1 // pred_region
      _
    $region5: #{tpu_custom_call.1} parent=1 // pred_fallthru
      _
    // Predicated region
    $region6: #{tpu_custom_call.1} parent=1 // pred_check
      _
    $region7: #{tpu_custom_call.1} parent=1 // pred_check_branch
      %14 = sbr.rel (0) target = $region9
    $region8: #{tpu_custom_call.1} parent=1 // pred_region
      _
    $region9: #{tpu_custom_call.1} parent=1 // pred_fallthru
      _
    // Predicated region
    $region10: #{tpu_custom_call.1} parent=1 // pred_check
      _
    $region11: #{tpu_custom_call.1} parent=1 // pred_check_branch
      %16 = sbr.rel (0) target = $region13
    $region12: #{tpu_custom_call.1} parent=1 // pred_region
      _
    $region13: #{tpu_custom_call.1} parent=1 // pred_fallthru
      _
    // Predicated region
    $region14: #{tpu_custom_call.1} parent=1 // pred_check
      _
    $region15: #{tpu_custom_call.1} parent=1 // pred_check_branch
      %18 = sbr.rel (0) target = $region17
    $region16: #{tpu_custom_call.1} parent=1 // pred_region
      _
    $region17: #{tpu_custom_call.1} parent=1 // pred_fallthru
      _
    // Predicated region
    $region18: #{tpu_custom_call.1} parent=1 // pred_check
      _
    $region19: #{tpu_custom_call.1} parent=1 // pred_check_branch
      %20 = sbr.rel (0) target = $region21
    $region20: #{tpu_custom_call.1} parent=1 // pred_region
      _
    $region21: #{tpu_custom_call.1} parent=1 // pred_fallthru
      _
    %v21 = vld [vmem:[%s0] sm:$0xff]
    %v22 = vld [vmem:[%s1] sm:$0xff]
    %v23 = vld [vmem:[%s1 + $0x8] sm:$0xff]
    %v24 = vld [vmem:[%s1 + $0x10] sm:$0xff]
    %v25 = vld [vmem:[%s1 + $0x18] sm:$0xff]
    %v26 = vld [vmem:[%s2] sm:$0x1]
    %v28 = vlaneseq
    %v29 = vshrl.u32 %v28, 7
    %v30 = vsub.s32 0, %v29
    %v31 = vrot.slane %v26, %v30
    %vm33 = vcmask 261120
    %v35 = vsel %vm33, %v21, 0
    %37 = vmatprep.subr.mxu0 0.0
    %38 = vmatpush1.msra.mxu0 0.0
    %39 = vmatprep.subr.mxu0 0.0
    %40 = vmatpush1.msra.mxu0 0.0
    %41 = vmatprep.subr.mxu0 0.0
    %42 = vmatpush1.msra.mxu0 0.0
    %43 = vmatprep.subr.mxu0 0.0
    %44 = vmatpush1.msra.mxu0 0.0
    %45 = vmatprep.subr.mxu0 0.0
    %46 = vmatpush1.msra.mxu0 0.0
    %47 = vmatprep.subr.mxu0 0.0
    %48 = vmatpush1.msra.mxu0 0.0
    %49 = vmatprep.subr.mxu0 0.0
    %50 = vmatpush1.msra.mxu0 0.0
    %51 = vmatprep.subr.mxu0 0.0
    %52 = vmatpush1.msra.mxu0 0.0
    %53 = vmatprep.subr.mxu0 0.0
    %54 = vmatpush1.msra.mxu0 0.0
    %55 = vmatprep.subr.mxu0 0.0
    %56 = vmatpush1.msra.mxu0 0.0
    %57 = vmatprep.subr.mxu0 0.0
    %58 = vmatpush1.msra.mxu0 0.0
    %59 = vmatprep.subr.mxu0 0.0
    %60 = vmatpush1.msra.mxu0 0.0
    %61 = vmatprep.subr.mxu0 0.0
    %62 = vmatpush1.msra.mxu0 %v25
    %63 = vmatprep.subr.mxu0 0.0
    %64 = vmatpush1.msra.mxu0 %v24
    %65 = vmatprep.subr.mxu0 0.0
    %66 = vmatpush1.msra.mxu0 %v23
    %67 = vmatprep.subr.mxu0 0.0
    %68 = vmatpush1.msra.mxu0 %v22
    %69 = vmatprep.subr.mxu0 0.0
    %70 = vmatpush2.msra.mxu0 0.0
    %71 = vmatprep.subr.mxu0 0.0
    %72 = vmatpush2.msra.mxu0 0.0
    %73 = vmatprep.subr.mxu0 0.0
    %74 = vmatpush2.msra.mxu0 0.0
    %75 = vmatprep.subr.mxu0 0.0
    %76 = vmatpush2.msra.mxu0 0.0
    %77 = vmatprep.subr.mxu0 0.0
    %78 = vmatpush2.msra.mxu0 0.0
    %79 = vmatprep.subr.mxu0 0.0
    %80 = vmatpush2.msra.mxu0 0.0
    %81 = vmatprep.subr.mxu0 0.0
    %82 = vmatpush2.msra.mxu0 0.0
    %83 = vmatprep.subr.mxu0 0.0
    %84 = vmatpush2.msra.mxu0 0.0
    %85 = vmatprep.subr.mxu0 0.0
    %86 = vmatpush2.msra.mxu0 0.0
    %87 = vmatprep.subr.mxu0 0.0
    %88 = vmatpush2.msra.mxu0 0.0
    %89 = vmatprep.subr.mxu0 0.0
    %90 = vmatpush2.msra.mxu0 0.0
    %91 = vmatprep.subr.mxu0 0.0
    %92 = vmatpush2.msra.mxu0 0.0
    %93 = vmatprep.subr.mxu0 0.0
    %94 = vmatpush2.msra.mxu0 0.0
    %95 = vmatprep.subr.mxu0 0.0
    %96 = vmatpush2.msra.mxu0 0.0
    %97 = vmatprep.subr.mxu0 0.0
    %98 = vmatpush2.msra.mxu0 0.0
    %99 = vmatprep.subr.mxu0 0.0
    %100 = vmatpush2.msra.mxu0 0.0
    %101 = vmatprep.mubr.f32.mxu0 0.0
    %102 = vmatmul.mubr.f32.gmra.mxu0 %v35
    %v103 = vpop.f32.mrf.mxu0
    %v104 = vadd.f32 %v31, %v103
    %v105 = vpop.f32.mrf.mxu0
    %106 = vdwg.mxu0
    %v107 = vxor.u32 %v104, 2147483648
    %v108 = vmul.f32 %v107, 1.442695
    %v109 = vpow.pop %v108
    %v110 = vadd.f32 %v109, 1.0
    %v111 = vrcp.pop %v110
    %v112 = vmul.f32 1.0, %v111
    %v113 = vld [vmem:[%s3] sm:$0xff]
    %v114 = vld [vmem:[%s3 + $0x8] sm:$0xff]
    %v115 = vld [vmem:[%s3 + $0x10] sm:$0xff]
    %v116 = vld [vmem:[%s3 + $0x18] sm:$0xff]
    %v117 = vld [vmem:[%s3 + $0x20] sm:$0xff]
    %v118 = vld [vmem:[%s3 + $0x28] sm:$0xff]
    %v119 = vld [vmem:[%s3 + $0x30] sm:$0xff]
    %v120 = vld [vmem:[%s3 + $0x38] sm:$0xff]
    %v121 = vld [vmem:[%s4] sm:$0x1]
    %v123 = vlaneseq
    %v124 = vshrl.u32 %v123, 7
    %v125 = vsub.s32 0, %v124
    %v126 = vrot.slane %v121, %v125
    %vm128 = vcmask 523264
    %v130 = vsel %vm128, %v112, 0
    %132 = vmatprep.subr.mxu0 0.0
    %133 = vmatpush1.msra.mxu0 0.0
    %134 = vmatprep.subr.mxu0 0.0
    %135 = vmatpush1.msra.mxu0 0.0
    %136 = vmatprep.subr.mxu0 0.0
    %137 = vmatpush1.msra.mxu0 0.0
    %138 = vmatprep.subr.mxu0 0.0
    %139 = vmatpush1.msra.mxu0 0.0
    %140 = vmatprep.subr.mxu0 0.0
    %141 = vmatpush1.msra.mxu0 0.0
    %142 = vmatprep.subr.mxu0 0.0
    %143 = vmatpush1.msra.mxu0 0.0
    %144 = vmatprep.subr.mxu0 0.0
    %145 = vmatpush1.msra.mxu0 0.0
    %146 = vmatprep.subr.mxu0 0.0
    %147 = vmatpush1.msra.mxu0 0.0
    %148 = vmatprep.subr.mxu0 0.0
    %149 = vmatpush1.msra.mxu0 %v120
    %150 = vmatprep.subr.mxu0 0.0
    %151 = vmatpush1.msra.mxu0 %v119
    %152 = vmatprep.subr.mxu0 0.0
    %153 = vmatpush1.msra.mxu0 %v118
    %154 = vmatprep.subr.mxu0 0.0
    %155 = vmatpush1.msra.mxu0 %v117
    %156 = vmatprep.subr.mxu0 0.0
    %157 = vmatpush1.msra.mxu0 %v116
    %158 = vmatprep.subr.mxu0 0.0
    %159 = vmatpush1.msra.mxu0 %v115
    %160 = vmatprep.subr.mxu0 0.0
    %161 = vmatpush1.msra.mxu0 %v114
    %162 = vmatprep.subr.mxu0 0.0
    %163 = vmatpush1.msra.mxu0 %v113
    %164 = vmatprep.subr.mxu0 0.0
    %165 = vmatpush2.msra.mxu0 0.0
    %166 = vmatprep.subr.mxu0 0.0
    %167 = vmatpush2.msra.mxu0 0.0
    %168 = vmatprep.subr.mxu0 0.0
    %169 = vmatpush2.msra.mxu0 0.0
    %170 = vmatprep.subr.mxu0 0.0
    %171 = vmatpush2.msra.mxu0 0.0
    %172 = vmatprep.subr.mxu0 0.0
    %173 = vmatpush2.msra.mxu0 0.0
    %174 = vmatprep.subr.mxu0 0.0
    %175 = vmatpush2.msra.mxu0 0.0
    %176 = vmatprep.subr.mxu0 0.0
    %177 = vmatpush2.msra.mxu0 0.0
    %178 = vmatprep.subr.mxu0 0.0
    %179 = vmatpush2.msra.mxu0 0.0
    %180 = vmatprep.subr.mxu0 0.0
    %181 = vmatpush2.msra.mxu0 0.0
    %182 = vmatprep.subr.mxu0 0.0
    %183 = vmatpush2.msra.mxu0 0.0
    %184 = vmatprep.subr.mxu0 0.0
    %185 = vmatpush2.msra.mxu0 0.0
    %186 = vmatprep.subr.mxu0 0.0
    %187 = vmatpush2.msra.mxu0 0.0
    %188 = vmatprep.subr.mxu0 0.0
    %189 = vmatpush2.msra.mxu0 0.0
    %190 = vmatprep.subr.mxu0 0.0
    %191 = vmatpush2.msra.mxu0 0.0
    %192 = vmatprep.subr.mxu0 0.0
    %193 = vmatpush2.msra.mxu0 0.0
    %194 = vmatprep.subr.mxu0 0.0
    %195 = vmatpush2.msra.mxu0 0.0
    %196 = vmatprep.mubr.f32.mxu0 0.0
    %197 = vmatmul.mubr.f32.gmra.mxu0 %v130
    %v198 = vpop.f32.mrf.mxu0
    %v199 = vadd.f32 %v126, %v198
    %v200 = vpop.f32.mrf.mxu0
    %201 = vdwg.mxu0
    %vm202 = vcmask 130048
    %203 = vst.msk [vmem:[#allocation2] sm:$0xff] %vm202, %v199
    // Predicated region
    $region22: #{tpu_custom_call.1} parent=1 // pred_check
      _
    $region23: #{tpu_custom_call.1} parent=1 // pred_check_branch
      %205 = sbr.rel (0) target = $region25
    $region24: #{tpu_custom_call.1} parent=1 // pred_region
      %s207 = ssub.s32 128, 128
      %208 = vsyncadd [#allocation3], %s207
      %s210 = sshll.u32 [#allocation2], 4
      %s211 = int_to_ptr.vmem [resolvable:$true] %s210
      %213 = dma.vmem_to_hbm [thread:$0]  %s211, 128, %s5, [#allocation3]
    $region25: #{tpu_custom_call.1} parent=1 // pred_fallthru
      _
    // Predicated region
    $region26: #{tpu_custom_call.1} parent=1 // pred_check
      _
    $region27: #{tpu_custom_call.1} parent=1 // pred_check_branch
      %215 = sbr.rel (0) target = $region29
    $region28: #{tpu_custom_call.1} parent=1 // pred_region
      %216 = dma.done [#allocation3], 128
    $region29: #{tpu_custom_call.1} parent=1 // pred_fallthru
      _
    %217 = vsyncpa [#allocation3], 1

</llo_original>
